<compile_context>
chip_gen: v5e
topology: v5e:2x2
jax: 0.10.0
libtpu: 0.0.40
codegen_flags: <defaults>
</compile_context>

<pallas_src>
import math

import jax
import jax.numpy as jnp
from jax.experimental import pallas as pl
from jax.experimental.pallas import tpu as pltpu


def _bayes_linear_kernel(x_ref, wm_ref, wlv_ref, we_ref,
                         bm_ref, blv_ref, be_ref, o_ref, acc_ref):
    k = pl.program_id(2)

    @pl.when(k == 0)
    def _():
        acc_ref[...] = jnp.zeros_like(acc_ref)

    # Reparameterised weight sample for this (K-tile, N-tile) block, built on-chip
    # (EUP exp + VPU fma) and consumed directly by the MXU.
    w = wm_ref[...] + jnp.exp(0.5 * wlv_ref[...]) * we_ref[...]
    acc_ref[...] += jnp.dot(x_ref[...], w, preferred_element_type=jnp.float32)

    @pl.when(k == pl.num_programs(2) - 1)
    def _():
        b = bm_ref[...] + jnp.exp(0.5 * blv_ref[...]) * be_ref[...]
        o_ref[...] = (acc_ref[...] + b).astype(o_ref.dtype)


def _round_up(a, b):
    return -(-a // b) * b


def _choose_tile(dim, max_tile):
    """Return (padded_dim, tile).  dim <= max_tile -> full-dim block (no padding)."""
    if dim <= max_tile:
        return dim, dim
    return _round_up(dim, max_tile), max_tile


def bayesian_linear(x, weight_mean, weight_logvar, bias_mean, bias_logvar,
                    weight_eps, bias_eps):
    """y = x @ (w_mean + exp(0.5*w_logvar)*w_eps).T + (b_mean + exp(0.5*b_logvar)*b_eps)."""
    orig_dtype = x.dtype
    *lead, K = x.shape
    N = weight_mean.shape[0]
    M = math.prod(lead) if lead else 1

    x2d = x.reshape(M, K).astype(jnp.float32)
    # [K, N] layout so the kernel computes x @ w and the output lane dim is out_features.
    wm = weight_mean.T.astype(jnp.float32)
    wlv = weight_logvar.T.astype(jnp.float32)
    we = weight_eps.T.astype(jnp.float32)
    bm = bias_mean.reshape(1, N).astype(jnp.float32)
    blv = bias_logvar.reshape(1, N).astype(jnp.float32)
    be = bias_eps.reshape(1, N).astype(jnp.float32)

    # Tile sizes (multiples of (8,128) when tiling; full-dim blocks when small).
    M_pad, tm = _choose_tile(M, 128)
    K_pad, tk = _choose_tile(K, 512)
    N_pad, tn = _choose_tile(N, 256)

    # Zero-padding is only applied when a dim actually needs tiling; padded weight
    # rows sample to exactly 0 (logvar pad 0 -> std 1, eps pad 0), padded x cols are 0.
    if (M_pad, K_pad) != (M, K):
        x2d = jnp.pad(x2d, ((0, M_pad - M), (0, K_pad - K)))
    if (K_pad, N_pad) != (K, N):
        pw = ((0, K_pad - K), (0, N_pad - N))
        wm, wlv, we = jnp.pad(wm, pw), jnp.pad(wlv, pw), jnp.pad(we, pw)
    if N_pad != N:
        pb = ((0, 0), (0, N_pad - N))
        bm, blv, be = jnp.pad(bm, pb), jnp.pad(blv, pb), jnp.pad(be, pb)

    grid = (M_pad // tm, N_pad // tn, K_pad // tk)

    itemsize = 4
    cost = pl.CostEstimate(
        flops=2 * M_pad * K_pad * N_pad,
        transcendentals=K_pad * N_pad * grid[0] + N_pad,
        bytes_accessed=(M_pad * K_pad + 3 * K_pad * N_pad + 3 * N_pad
                        + M_pad * N_pad) * itemsize,
    )

    w_spec = pl.BlockSpec((tk, tn), lambda i, j, k: (k, j))
    b_spec = pl.BlockSpec((1, tn), lambda i, j, k: (0, j))

    out2d = pl.pallas_call(
        _bayes_linear_kernel,
        out_shape=jax.ShapeDtypeStruct((M_pad, N_pad), jnp.float32),
        grid_spec=pltpu.PrefetchScalarGridSpec(
            num_scalar_prefetch=0,
            grid=grid,
            in_specs=[
                pl.BlockSpec((tm, tk), lambda i, j, k: (i, k)),   # x
                w_spec, w_spec, w_spec,                           # w mean / logvar / eps
                b_spec, b_spec, b_spec,                           # b mean / logvar / eps
            ],
            out_specs=pl.BlockSpec((tm, tn), lambda i, j, k: (i, j)),
            scratch_shapes=[pltpu.VMEM((tm, tn), jnp.float32)],
        ),
        compiler_params=pltpu.CompilerParams(
            dimension_semantics=("parallel", "parallel", "arbitrary"),
        ),
        cost_estimate=cost,
    )(x2d, wm, wlv, we, bm, blv, be)

    if (M_pad, N_pad) != (M, N):
        out2d = out2d[:M, :N]
    return out2d.reshape(*lead, N).astype(orig_dtype)


def kl_divergence(weight_mean, weight_logvar, bias_mean, bias_logvar, prior_std=1.0):
    """Scalar-reduction regulariser; trivial in plain JAX (no Pallas kernel needed)."""
    p2 = prior_std ** 2

    def _kl(mean, logvar):
        return 0.5 * jnp.sum(mean ** 2 / p2 + jnp.exp(logvar) / p2
                             - logvar + math.log(p2) - 1.0)

    kl = _kl(weight_mean, weight_logvar)
    if bias_mean is not None:
        kl = kl + _kl(bias_mean, bias_logvar)
    return kl


if __name__ == "__main__":
    key = jax.random.PRNGKey(0)
    k_x, k_wm, k_bm, k_we, k_be = jax.random.split(key, 5)

    batch, seq, in_features, out_features = 2, 8, 32, 64
    x = jax.random.normal(k_x, (batch, seq, in_features), dtype=jnp.float32)
    weight_mean = 0.1 * jax.random.normal(k_wm, (out_features, in_features), jnp.float32)
    weight_logvar = jnp.full((out_features, in_features), -5.0, jnp.float32)
    bias_mean = 0.1 * jax.random.normal(k_bm, (out_features,), jnp.float32)
    bias_logvar = jnp.full((out_features,), -5.0, jnp.float32)

    # Reparameterisation noise (randn_like equivalent), drawn fresh per forward pass.
    weight_eps = jax.random.normal(k_we, (out_features, in_features), jnp.float32)
    bias_eps = jax.random.normal(k_be, (out_features,), jnp.float32)

    y = bayesian_linear(x, weight_mean, weight_logvar, bias_mean, bias_logvar,
                        weight_eps, bias_eps)
    y = jax.block_until_ready(y)

    # Pure-JAX reference with the same sampled eps.
    w = weight_mean + jnp.exp(0.5 * weight_logvar) * weight_eps
    b = bias_mean + jnp.exp(0.5 * bias_logvar) * bias_eps
    ref = jnp.einsum("bsi,oi->bso", x, w) + b

    assert y.shape == (batch, seq, out_features) and y.dtype == x.dtype
    assert bool(jnp.allclose(y, ref, rtol=1e-5, atol=1e-5)), "mismatch vs reference"

    _ = kl_divergence(weight_mean, weight_logvar, bias_mean, bias_logvar)

    print("KERNEL_OK")
</pallas_src>

<mosaic_0001>
module attributes {stable_mosaic.version = 11 : i64} {
  func.func @_bayes_linear_kernel(%arg0: i32, %arg1: i32, %arg2: i32, %arg3: memref<16x32xf32, #tpu.memory_space<vmem>>, %arg4: memref<32x64xf32, #tpu.memory_space<vmem>>, %arg5: memref<32x64xf32, #tpu.memory_space<vmem>>, %arg6: memref<32x64xf32, #tpu.memory_space<vmem>>, %arg7: memref<1x64xf32, #tpu.memory_space<vmem>>, %arg8: memref<1x64xf32, #tpu.memory_space<vmem>>, %arg9: memref<1x64xf32, #tpu.memory_space<vmem>>, %arg10: memref<16x64xf32, #tpu.memory_space<vmem>>, %arg11: memref<16x64xf32, #tpu.memory_space<vmem>>) attributes {dimension_semantics = [#tpu.dimension_semantics<parallel>, #tpu.dimension_semantics<parallel>, #tpu.dimension_semantics<arbitrary>], iteration_bounds = array<i64: 1, 1, 1>, scalar_prefetch = 0 : i64, scratch_operands = 1 : i64, tpu.core_type = #tpu.core_type<tc>, window_params = [{transform_indices = @transform_0, window_bounds = array<i64: 16, 32>}, {transform_indices = @transform_1, window_bounds = array<i64: 32, 64>}, {transform_indices = @transform_2, window_bounds = array<i64: 32, 64>}, {transform_indices = @transform_3, window_bounds = array<i64: 32, 64>}, {transform_indices = @transform_4, window_bounds = array<i64: 1, 64>}, {transform_indices = @transform_5, window_bounds = array<i64: 1, 64>}, {transform_indices = @transform_6, window_bounds = array<i64: 1, 64>}, {transform_indices = @transform_7, window_bounds = array<i64: 16, 64>}]} {
    %c0_i32 = arith.constant 0 : i32
    %0 = arith.cmpi eq, %arg2, %c0_i32 : i32
    %1 = arith.extui %0 : i1 to i32
    %c0_i32_0 = arith.constant 0 : i32
    %2 = arith.cmpi ne, %1, %c0_i32_0 : i32
    scf.if %2 {
      %cst_15 = arith.constant 0.000000e+00 : f32
      %19 = vector.broadcast %cst_15 : f32 to vector<16x64xf32>
      %c0_16 = arith.constant 0 : index
      %c0_17 = arith.constant 0 : index
      %20 = vector.load %arg11[%c0_16, %c0_17] : memref<16x64xf32, #tpu.memory_space<vmem>>, vector<16x64xf32>
      tpu.vector_store %arg11[%c0_16, %c0_17], %19 {strides = array<i32>} : memref<16x64xf32, #tpu.memory_space<vmem>>, vector<16x64xf32>,
    } else {
    }
    %c0 = arith.constant 0 : index
    %c0_1 = arith.constant 0 : index
    %3 = vector.load %arg4[%c0, %c0_1] : memref<32x64xf32, #tpu.memory_space<vmem>>, vector<32x64xf32>
    %c0_2 = arith.constant 0 : index
    %c0_3 = arith.constant 0 : index
    %4 = vector.load %arg5[%c0_2, %c0_3] : memref<32x64xf32, #tpu.memory_space<vmem>>, vector<32x64xf32>
    %cst = arith.constant 5.000000e-01 : f32
    %5 = vector.broadcast %cst : f32 to vector<32x64xf32>
    %6 = arith.mulf %5, %4 : vector<32x64xf32>
    %7 = math.exp %6 : vector<32x64xf32>
    %c0_4 = arith.constant 0 : index
    %c0_5 = arith.constant 0 : index
    %8 = vector.load %arg6[%c0_4, %c0_5] : memref<32x64xf32, #tpu.memory_space<vmem>>, vector<32x64xf32>
    %9 = arith.mulf %7, %8 : vector<32x64xf32>
    %10 = arith.addf %3, %9 : vector<32x64xf32>
    %c0_6 = arith.constant 0 : index
    %c0_7 = arith.constant 0 : index
    %11 = vector.load %arg11[%c0_6, %c0_7] : memref<16x64xf32, #tpu.memory_space<vmem>>, vector<16x64xf32>
    %c0_8 = arith.constant 0 : index
    %c0_9 = arith.constant 0 : index
    %12 = vector.load %arg3[%c0_8, %c0_9] : memref<16x32xf32, #tpu.memory_space<vmem>>, vector<16x32xf32>
    %cst_10 = arith.constant dense<0.000000e+00> : vector<16x64xf32>
    %13 = tpu.matmul %12, %10, %cst_10 {dimension_numbers = #tpu.dot_dimension_numbers<[1], [0], [0], [1], [0, 0, 1, 1], [], []>} : vector<16x32xf32>, vector<32x64xf32>, vector<16x64xf32> -> vector<16x64xf32>
    %14 = arith.addf %11, %13 : vector<16x64xf32>
    %c0_11 = arith.constant 0 : index
    %c0_12 = arith.constant 0 : index
    %15 = vector.load %arg11[%c0_11, %c0_12] : memref<16x64xf32, #tpu.memory_space<vmem>>, vector<16x64xf32>
    tpu.vector_store %arg11[%c0_11, %c0_12], %14 {strides = array<i32>} : memref<16x64xf32, #tpu.memory_space<vmem>>, vector<16x64xf32>,
    %c0_i32_13 = arith.constant 0 : i32
    %16 = arith.cmpi eq, %arg2, %c0_i32_13 : i32
    %17 = arith.extui %16 : i1 to i32
    %c0_i32_14 = arith.constant 0 : i32
    %18 = arith.cmpi ne, %17, %c0_i32_14 : i32
    scf.if %18 {
      %c0_15 = arith.constant 0 : index
      %c0_16 = arith.constant 0 : index
      %19 = vector.load %arg7[%c0_15, %c0_16] : memref<1x64xf32, #tpu.memory_space<vmem>>, vector<1x64xf32>
      %c0_17 = arith.constant 0 : index
      %c0_18 = arith.constant 0 : index
      %20 = vector.load %arg8[%c0_17, %c0_18] : memref<1x64xf32, #tpu.memory_space<vmem>>, vector<1x64xf32>
      %cst_19 = arith.constant 5.000000e-01 : f32
      %21 = vector.broadcast %cst_19 : f32 to vector<1x64xf32>
      %22 = arith.mulf %21, %20 : vector<1x64xf32>
      %23 = math.exp %22 : vector<1x64xf32>
      %c0_20 = arith.constant 0 : index
      %c0_21 = arith.constant 0 : index
      %24 = vector.load %arg9[%c0_20, %c0_21] : memref<1x64xf32, #tpu.memory_space<vmem>>, vector<1x64xf32>
      %25 = arith.mulf %23, %24 : vector<1x64xf32>
      %26 = arith.addf %19, %25 : vector<1x64xf32>
      %c0_22 = arith.constant 0 : index
      %c0_23 = arith.constant 0 : index
      %27 = vector.load %arg11[%c0_22, %c0_23] : memref<16x64xf32, #tpu.memory_space<vmem>>, vector<16x64xf32>
      %28 = vector.broadcast %26 : vector<1x64xf32> to vector<16x64xf32>
      %29 = arith.addf %27, %28 : vector<16x64xf32>
      %c0_24 = arith.constant 0 : index
      %c0_25 = arith.constant 0 : index
      %30 = vector.load %arg10[%c0_24, %c0_25] : memref<16x64xf32, #tpu.memory_space<vmem>>, vector<16x64xf32>
      tpu.vector_store %arg10[%c0_24, %c0_25], %29 {strides = array<i32>} : memref<16x64xf32, #tpu.memory_space<vmem>>, vector<16x64xf32>,
    } else {
    }
    return
  }
  func.func @transform_0(%arg0: i32, %arg1: i32, %arg2: i32) -> (i32, i32) {
    %c0_i32 = arith.constant 0 : i32
    return %arg0, %arg2 : i32, i32
  }
  func.func @transform_1(%arg0: i32, %arg1: i32, %arg2: i32) -> (i32, i32) {
    %c0_i32 = arith.constant 0 : i32
    return %arg2, %arg1 : i32, i32
  }
  func.func @transform_2(%arg0: i32, %arg1: i32, %arg2: i32) -> (i32, i32) {
    %c0_i32 = arith.constant 0 : i32
    return %arg2, %arg1 : i32, i32
  }
  func.func @transform_3(%arg0: i32, %arg1: i32, %arg2: i32) -> (i32, i32) {
    %c0_i32 = arith.constant 0 : i32
    return %arg2, %arg1 : i32, i32
  }
  func.func @transform_4(%arg0: i32, %arg1: i32, %arg2: i32) -> (i32, i32) {
    %c0_i32 = arith.constant 0 : i32
    %c0_i32_0 = arith.constant 0 : i32
    return %c0_i32, %arg1 : i32, i32
  }
  func.func @transform_5(%arg0: i32, %arg1: i32, %arg2: i32) -> (i32, i32) {
    %c0_i32 = arith.constant 0 : i32
    %c0_i32_0 = arith.constant 0 : i32
    return %c0_i32, %arg1 : i32, i32
  }
  func.func @transform_6(%arg0: i32, %arg1: i32, %arg2: i32) -> (i32, i32) {
    %c0_i32 = arith.constant 0 : i32
    %c0_i32_0 = arith.constant 0 : i32
    return %c0_i32, %arg1 : i32, i32
  }
  func.func @transform_7(%arg0: i32, %arg1: i32, %arg2: i32) -> (i32, i32) {
    %c0_i32 = arith.constant 0 : i32
    return %arg0, %arg1 : i32, i32
  }
}

</mosaic_0001>

<llo_original>
// kernel: tpu_custom_call.1
$region0: #{tpu_custom_call.1}
  #allocation0 [shape = 'u32[]', space=smem, size = 0x4, offset = 0x4, fixed_abs, tag = 'smem constant byte address 0x4 - core index']
  #allocation1 [shape = 'u32[72,128]{1,0:T(1,128)}', space=vmem, size = 0x9000, scoped, tag = 'internal scratch']
  #allocation2 [shape = 'f32[16,64]{1,0:T(8,128)}', space=vmem, size = 0x2000, scoped, tag = 'scratch operand']
  %s0 = inlined_call_operand.hbm [shape: f32[16,32], index: 0, kind: input, shape index: {}]
  %s1 = inlined_call_operand.hbm [shape: f32[32,64], index: 1, kind: input, shape index: {}]
  %s2 = inlined_call_operand.hbm [shape: f32[32,64], index: 2, kind: input, shape index: {}]
  %s3 = inlined_call_operand.hbm [shape: f32[32,64], index: 3, kind: input, shape index: {}]
  %s4 = inlined_call_operand.vmem [shape: f32[1,64], index: 4, kind: input, shape index: {}]
  %s5 = inlined_call_operand.vmem [shape: f32[1,64], index: 5, kind: input, shape index: {}]
  %s6 = inlined_call_operand.vmem [shape: f32[1,64], index: 6, kind: input, shape index: {}]
  %s7 = inlined_call_operand.hbm [shape: f32[16,64], index: 7, kind: output, shape index: {}]
  %s8 = sld [smem:[#allocation0]]
  $region62: #{tpu_custom_call.1} parent=0
    _
  %s10 = ssub.s32 1, %s8
  %s11 = scalar_select 0, %s10, %s8
  $region1: #{tpu_custom_call.1} parent=0
    #allocation3 [shape = 'u8[8192]{0}', space=vmem, size = 0x2000, scoped, tag = 'input window, operand 0, single buffered']
    #allocation4 [shape = 's32[1]{0}', space=sflag, size = 0x4, scoped, tag = 'scoped memory for tpu_custom_call.1']
    #allocation5 [shape = 's32[1]{0}', space=sflag, size = 0x4, scoped, tag = 'scoped memory for tpu_custom_call.1']
    #allocation6 [shape = 'u8[16384]{0}', space=vmem, size = 0x4000, scoped, tag = 'input window, operand 1, single buffered']
    #allocation7 [shape = 's32[1]{0}', space=sflag, size = 0x4, scoped, tag = 'scoped memory for tpu_custom_call.1']
    #allocation8 [shape = 'u8[16384]{0}', space=vmem, size = 0x4000, scoped, tag = 'input window, operand 2, single buffered']
    #allocation9 [shape = 'u8[16384]{0}', space=vmem, size = 0x4000, scoped, tag = 'input window, operand 3, single buffered']
    #allocation10 [shape = 's32[1]{0}', space=sflag, size = 0x4, scoped, tag = 'scoped memory for tpu_custom_call.1']
    #allocation11 [shape = 'u8[8192]{0}', space=vmem, size = 0x2000, scoped, tag = 'output window, operand 0, single buffered']
    %12 = vsyncpa [#allocation4], 0
    %13 = vsyncpa [#allocation7], 0
    %14 = vsyncpa [#allocation10], 0
    %15 = vsyncpa [#allocation5], 0
    // Predicated region
    $region2: #{tpu_custom_call.1} parent=1 // pred_check
      _
    $region3: #{tpu_custom_call.1} parent=1 // pred_check_branch
      %17 = sbr.rel (0) target = $region5
    $region4: #{tpu_custom_call.1} parent=1 // pred_region
      %19 = vsyncadd [#allocation4], 0
      %s20 = sshll.u32 %s0, 4
      %s21 = int_to_ptr.hbm [resolvable:$true] %s20
      %s22 = sshll.u32 [#allocation3], 4
      %s23 = int_to_ptr.vmem [resolvable:$true] %s22
      %28 = dma.hbm_to_vmem [thread:$0]  %s21, 256, %s23, [#allocation4], 128, 128, 8
    $region5: #{tpu_custom_call.1} parent=1 // pred_fallthru
      _
    // Predicated region
    $region6: #{tpu_custom_call.1} parent=1 // pred_check
      _
    $region7: #{tpu_custom_call.1} parent=1 // pred_check_branch
      %30 = sbr.rel (0) target = $region9
    $region8: #{tpu_custom_call.1} parent=1 // pred_region
      %32 = vsyncadd [#allocation7], 0
      %s33 = sshll.u32 %s1, 4
      %s34 = int_to_ptr.hbm [resolvable:$true] %s33
      %s35 = sshll.u32 [#allocation6], 4
      %s36 = int_to_ptr.vmem [resolvable:$true] %s35
      %41 = dma.hbm_to_vmem [thread:$0]  %s34, 512, %s36, [#allocation7], 128, 128, 8
    $region9: #{tpu_custom_call.1} parent=1 // pred_fallthru
      _
    // Predicated region
    $region10: #{tpu_custom_call.1} parent=1 // pred_check
      _
    $region11: #{tpu_custom_call.1} parent=1 // pred_check_branch
      %43 = sbr.rel (0) target = $region13
    $region12: #{tpu_custom_call.1} parent=1 // pred_region
      %45 = vsyncadd [#allocation7], 0
      %s46 = sshll.u32 %s2, 4
      %s47 = int_to_ptr.hbm [resolvable:$true] %s46
      %s48 = sshll.u32 [#allocation8], 4
      %s49 = int_to_ptr.vmem [resolvable:$true] %s48
      %54 = dma.hbm_to_vmem [thread:$0]  %s47, 512, %s49, [#allocation7], 128, 128, 8
    $region13: #{tpu_custom_call.1} parent=1 // pred_fallthru
      _
    // Predicated region
    $region14: #{tpu_custom_call.1} parent=1 // pred_check
      _
    $region15: #{tpu_custom_call.1} parent=1 // pred_check_branch
      %56 = sbr.rel (0) target = $region17
    $region16: #{tpu_custom_call.1} parent=1 // pred_region
      %58 = vsyncadd [#allocation10], 0
      %s59 = sshll.u32 %s3, 4
      %s60 = int_to_ptr.hbm [resolvable:$true] %s59
      %s61 = sshll.u32 [#allocation9], 4
      %s62 = int_to_ptr.vmem [resolvable:$true] %s61
      %67 = dma.hbm_to_vmem [thread:$0]  %s60, 512, %s62, [#allocation10], 128, 128, 8
    $region17: #{tpu_custom_call.1} parent=1 // pred_fallthru
      _
    // Predicated region
    $region18: #{tpu_custom_call.1} parent=1 // pred_check
      _
    $region19: #{tpu_custom_call.1} parent=1 // pred_check_branch
      %69 = sbr.rel (0) target = $region21
    $region20: #{tpu_custom_call.1} parent=1 // pred_region
      _
    $region21: #{tpu_custom_call.1} parent=1 // pred_fallthru
      _
    // Predicated region
    $region22: #{tpu_custom_call.1} parent=1 // pred_check
      _
    $region23: #{tpu_custom_call.1} parent=1 // pred_check_branch
      %71 = sbr.rel (0) target = $region25
    $region24: #{tpu_custom_call.1} parent=1 // pred_region
      _
    $region25: #{tpu_custom_call.1} parent=1 // pred_fallthru
      _
    // Predicated region
    $region26: #{tpu_custom_call.1} parent=1 // pred_check
      _
    $region27: #{tpu_custom_call.1} parent=1 // pred_check_branch
      %73 = sbr.rel (0) target = $region29
    $region28: #{tpu_custom_call.1} parent=1 // pred_region
      _
    $region29: #{tpu_custom_call.1} parent=1 // pred_fallthru
      _
    // Predicated region
    $region30: #{tpu_custom_call.1} parent=1 // pred_check
      _
    $region31: #{tpu_custom_call.1} parent=1 // pred_check_branch
      %75 = sbr.rel (0) target = $region33
    $region32: #{tpu_custom_call.1} parent=1 // pred_region
      %77 = dma.done [#allocation4], 256
    $region33: #{tpu_custom_call.1} parent=1 // pred_fallthru
      _
    // Predicated region
    $region34: #{tpu_custom_call.1} parent=1 // pred_check
      _
    $region35: #{tpu_custom_call.1} parent=1 // pred_check_branch
      %79 = sbr.rel (0) target = $region37
    $region36: #{tpu_custom_call.1} parent=1 // pred_region
      %81 = dma.done [#allocation7], 512
    $region37: #{tpu_custom_call.1} parent=1 // pred_fallthru
      _
    // Predicated region
    $region38: #{tpu_custom_call.1} parent=1 // pred_check
      _
    $region39: #{tpu_custom_call.1} parent=1 // pred_check_branch
      %83 = sbr.rel (0) target = $region41
    $region40: #{tpu_custom_call.1} parent=1 // pred_region
      %85 = dma.done [#allocation7], 512
    $region41: #{tpu_custom_call.1} parent=1 // pred_fallthru
      _
    // Predicated region
    $region42: #{tpu_custom_call.1} parent=1 // pred_check
      _
    $region43: #{tpu_custom_call.1} parent=1 // pred_check_branch
      %87 = sbr.rel (0) target = $region45
    $region44: #{tpu_custom_call.1} parent=1 // pred_region
      %89 = dma.done [#allocation10], 512
    $region45: #{tpu_custom_call.1} parent=1 // pred_fallthru
      _
    %p90 = scmp.eq.s32.totalorder 0, 0
    // Predicated region
    $region46: #{tpu_custom_call.1} parent=1 // pred_check
      %p91 = pneg %p90
    $region47: #{tpu_custom_call.1} parent=1 // pred_check_branch
      %93 = sbr.rel (%p91) target = $region49
    $region48: #{tpu_custom_call.1} parent=1 // pred_region
      %vm94 = vcmask 523264
      %95 = vst.msk [vmem:[#allocation2] sm:$0xff] %vm94, 0.0
      %96 = vst.msk [vmem:[#allocation2 + $0x8] sm:$0xff] %vm94, 0.0
    $region49: #{tpu_custom_call.1} parent=1 // pred_fallthru
      _
    %v97 = vld [vmem:[#allocation6] sm:$0xff]
    %v98 = vld [vmem:[#allocation6 + $0x8] sm:$0xff]
    %v99 = vld [vmem:[#allocation6 + $0x10] sm:$0xff]
    %v100 = vld [vmem:[#allocation6 + $0x18] sm:$0xff]
    %v101 = vld [vmem:[#allocation8] sm:$0xff]
    %v102 = vld [vmem:[#allocation8 + $0x8] sm:$0xff]
    %v103 = vld [vmem:[#allocation8 + $0x10] sm:$0xff]
    %v104 = vld [vmem:[#allocation8 + $0x18] sm:$0xff]
    %v105 = vmul.f32 %v101, 0.5
    %v106 = vmul.f32 %v102, 0.5
    %v107 = vmul.f32 %v103, 0.5
    %v108 = vmul.f32 %v104, 0.5
    %v109 = vmul.f32 %v105, 1.442695
    %v110 = vpow.pop %v109
    %v111 = vmul.f32 %v106, 1.442695
    %v112 = vpow.pop %v111
    %v113 = vmul.f32 %v107, 1.442695
    %v114 = vpow.pop %v113
    %v115 = vmul.f32 %v108, 1.442695
    %v116 = vpow.pop %v115
    %v117 = vld [vmem:[#allocation9] sm:$0xff]
    %v118 = vld [vmem:[#allocation9 + $0x8] sm:$0xff]
    %v119 = vld [vmem:[#allocation9 + $0x10] sm:$0xff]
    %v120 = vld [vmem:[#allocation9 + $0x18] sm:$0xff]
    %v121 = vmul.f32 %v110, %v117
    %v122 = vmul.f32 %v112, %v118
    %v123 = vmul.f32 %v114, %v119
    %v124 = vmul.f32 %v116, %v120
    %v125 = vadd.f32 %v97, %v121
    %v126 = vadd.f32 %v98, %v122
    %v127 = vadd.f32 %v99, %v123
    %v128 = vadd.f32 %v100, %v124
    %v129 = vld [vmem:[#allocation2] sm:$0xff]
    %v130 = vld [vmem:[#allocation2 + $0x8] sm:$0xff]
    %v131 = vld [vmem:[#allocation3] sm:$0xff]
    %v132 = vld [vmem:[#allocation3 + $0x8] sm:$0xff]
    %vm133 = vcmask 261120
    %v135 = vsel %vm133, %v131, 0
    %v138 = vsel %vm133, %v132, 0
    %140 = vmatpush.msra.mxu0 0.0
    %141 = vmatpush.msra.mxu0 0.0
    %142 = vmatpush.msra.mxu0 0.0
    %143 = vmatpush.msra.mxu0 0.0
    %144 = vmatpush.msra.mxu0 0.0
    %145 = vmatpush.msra.mxu0 0.0
    %146 = vmatpush.msra.mxu0 0.0
    %147 = vmatpush.msra.mxu0 0.0
    %148 = vmatpush.msra.mxu0 0.0
    %149 = vmatpush.msra.mxu0 0.0
    %150 = vmatpush.msra.mxu0 0.0
    %151 = vmatpush.msra.mxu0 0.0
    %152 = vmatpush.msra.mxu0 %v128
    %153 = vmatpush.msra.mxu0 %v127
    %154 = vmatpush.msra.mxu0 %v126
    %155 = vmatpush.msra.mxu0 %v125
    %156 = vmatmul.f32.gmra.mxu0 %v135
    %v157 = vpop.f32.mrf.mxu0
    %v158 = vadd.f32 0.0, %v157
    %159 = vmatmul.f32.gmra.mxu0 %v138
    %v160 = vpop.f32.mrf.mxu0
    %v161 = vadd.f32 0.0, %v160
    %162 = vdwg.mxu0
    %v163 = vadd.f32 %v129, %v158
    %v164 = vadd.f32 %v130, %v161
    %vm165 = vcmask 523264
    %166 = vst.msk [vmem:[#allocation2] sm:$0xff] %vm165, %v163
    %167 = vst.msk [vmem:[#allocation2 + $0x8] sm:$0xff] %vm165, %v164
    // Predicated region
    $region50: #{tpu_custom_call.1} parent=1 // pred_check
      %p168 = pneg %p90
    $region51: #{tpu_custom_call.1} parent=1 // pred_check_branch
      %170 = sbr.rel (%p168) target = $region53
    $region52: #{tpu_custom_call.1} parent=1 // pred_region
      %v171 = vld [vmem:[%s4] sm:$0x1]
      %v172 = vld [vmem:[%s5] sm:$0x1]
      %v173 = vmul.f32 %v172, 0.5
      %v174 = vmul.f32 %v173, 1.442695
      %v175 = vpow.pop %v174
      %v176 = vld [vmem:[%s6] sm:$0x1]
      %v177 = vmul.f32 %v175, %v176
      %v178 = vadd.f32 %v171, %v177
      %v179 = vld [vmem:[#allocation2] sm:$0xff]
      %v180 = vld [vmem:[#allocation2 + $0x8] sm:$0xff]
      %v182 = vperm.slane %v178, 0
      %v184 = vadd.f32 %v179, %v182
      %v185 = vadd.f32 %v180, %v182
      %186 = vst.msk [vmem:[#allocation11] sm:$0xff] %vm165, %v184
      %187 = vst.msk [vmem:[#allocation11 + $0x8] sm:$0xff] %vm165, %v185
    $region53: #{tpu_custom_call.1} parent=1 // pred_fallthru
      _
    // Predicated region
    $region54: #{tpu_custom_call.1} parent=1 // pred_check
      _
    $region55: #{tpu_custom_call.1} parent=1 // pred_check_branch
      %189 = sbr.rel (0) target = $region57
    $region56: #{tpu_custom_call.1} parent=1 // pred_region
      %191 = vsyncadd [#allocation5], 0
      %s192 = sshll.u32 [#allocation11], 4
      %s193 = int_to_ptr.vmem [resolvable:$true] %s192
      %s194 = sshll.u32 %s7, 4
      %s195 = int_to_ptr.hbm [resolvable:$true] %s194
      %200 = dma.vmem_to_hbm [thread:$0]  %s193, 256, %s195, [#allocation5], 128, 128, 8
    $region57: #{tpu_custom_call.1} parent=1 // pred_fallthru
      _
    // Predicated region
    $region58: #{tpu_custom_call.1} parent=1 // pred_check
      _
    $region59: #{tpu_custom_call.1} parent=1 // pred_check_branch
      %202 = sbr.rel (0) target = $region61
    $region60: #{tpu_custom_call.1} parent=1 // pred_region
      %204 = dma.done [#allocation5], 256
    $region61: #{tpu_custom_call.1} parent=1 // pred_fallthru
      _
    %205 = vsyncpa [#allocation4], 1
    %206 = vsyncpa [#allocation7], 1
    %207 = vsyncpa [#allocation10], 1
    %208 = vsyncpa [#allocation5], 1

</llo_original>
